<compile_context>
chip_gen: v7x
topology: tpu7x:2x2x1
jax: 0.10.0
libtpu: 0.0.40
codegen_flags: <defaults>
</compile_context>

<pallas_src>
import numpy as np
import jax
import jax.numpy as jnp
from jax import lax
from jax.experimental import pallas as pl
from jax.experimental.pallas import tpu as pltpu

BN_EPS = 1e-5
LANE = 128      # f32 lane width
SUBLANE = 8     # f32 sublane width


def _round_up(n, m):
    return ((n + m - 1) // m) * m


# ------------- fused: per-relation Linear + BN + ReLU + avg pooling -----------
def encoder_kernel(cnt_ref, x_ref, wt_ref, b_ref, pool_ref, tinv_ref, out_ref):
    r = pl.program_id(0)

    # Output tile is resident across the whole (arbitrary) relation axis, so
    # it doubles as the pooling accumulator.
    @pl.when(r == 0)
    def _():
        out_ref[...] = jnp.zeros_like(out_ref)

    cnt = cnt_ref[r]                                  # group size (SMEM scalar)
    x = x_ref[0]                                      # [G, Dp]
    w = wt_ref[0]                                     # [Dp, Dp] (pre-transposed)
    bias = b_ref[0]                                   # [1, Dp]
    G = x.shape[0]

    # One MXU pass for this relation's rows only.
    z = jnp.dot(x, w, preferred_element_type=jnp.float32) + bias    # [G, Dp]

    # Validity mask: groups are zero-padded up to G rows.
    row_ids = lax.broadcasted_iota(jnp.int32, (G, 1), 0)
    rowmask = (row_ids < cnt).astype(jnp.float32)                   # [G, 1]

    # Single-pass batch statistics (masked sum / sum-of-squares), EUP recip.
    cnt_f = jnp.maximum(cnt.astype(jnp.float32), 1.0)
    inv = pl.reciprocal(cnt_f * jnp.ones((1, 1), jnp.float32), approx=True)
    zm = rowmask * z
    s1 = jnp.sum(zm, axis=0, keepdims=True)                         # [1, Dp]
    s2 = jnp.sum(zm * z, axis=0, keepdims=True)                     # [1, Dp]
    mean = s1 * inv
    var = jnp.maximum(s2 * inv - mean * mean, 0.0)
    z_bn = (z - mean) * lax.rsqrt(var + BN_EPS)

    # BatchNorm1d skipped when the relation-space batch has a single row.
    z_sel = jnp.where(cnt > 1, z_bn, z)
    z_act = jnp.maximum(z_sel, 0.0) * rowmask         # ReLU; zero padded rows

    # Fold this relation's rows into every target's running sum (MXU).
    out_ref[...] += jnp.dot(pool_ref[0], z_act, preferred_element_type=jnp.float32)

    # Finalize: divide each target by its neighbor count ('avg' pooling).
    @pl.when(r == pl.num_programs(0) - 1)
    def _():
        out_ref[...] = out_ref[...] * tinv_ref[...]


def encoder_forward(x, W, b, rel_of_v, tgt_of_v, T):
    """x:[V,D] f32, W:[R,D,D], b:[R,D] stacked transformH/transformT params.

    rel_of_v[v] in [0, R): relation space of neighbor v (even=H, odd=T).
    tgt_of_v[v] in [0, T): target entity neighbor v is assigned to.
    """
    x = np.asarray(x, np.float32)
    W = np.asarray(W, np.float32)
    b = np.asarray(b, np.float32)
    V, D = x.shape
    R = W.shape[0]
    Dp = _round_up(D, LANE)

    # ---- host-side graph bookkeeping: group neighbors by relation space -----
    groups = [[v for v in range(V) if rel_of_v[v] == r] for r in range(R)]
    counts = np.array([len(g) for g in groups], np.int32)
    G = _round_up(max(1, int(counts.max())), SUBLANE)     # padded rows / group
    Tp = _round_up(max(1, T), SUBLANE)

    x_g = np.zeros((R, G, Dp), np.float32)                # grouped, padded x
    wt_p = np.zeros((R, Dp, Dp), np.float32)              # W[r].T, zero-padded
    b_p = np.zeros((R, 1, Dp), np.float32)
    pool = np.zeros((R, Tp, G), np.float32)               # 0/1 target<-row, per r
    tcnt = np.zeros((Tp, 1), np.float32)                  # neighbors per target
    for r in range(R):
        wt_p[r, :D, :D] = W[r].T        # pre-transposed so kernel does x @ W.T
        b_p[r, 0, :D] = b[r]
        for i, v in enumerate(groups[r]):
            x_g[r, i, :D] = x[v]
            t = tgt_of_v[v]
            pool[r, t, i] = 1.0
            tcnt[t, 0] += 1.0
    tinv = np.where(tcnt > 0.0, 1.0 / np.maximum(tcnt, 1.0), 0.0).astype(np.float32)
    # TODO(synk): for large graphs replace the dense per-relation pool matmul
    # with a scalar-prefetched segment-id scatter-add (dense pool is O(T*V)).

    counts_j = jnp.asarray(counts)
    x_g = jnp.asarray(x_g)
    wt_p = jnp.asarray(wt_p)
    b_p = jnp.asarray(b_p)
    pool = jnp.asarray(pool)
    tinv = jnp.asarray(tinv)
    # TODO(synk): on v6e/v7x cast x_g/wt_p (and pool) to bf16 here for ~2x MXU
    # throughput; kept f32 so the strict numeric check below passes.

    out_pad = pl.pallas_call(
        encoder_kernel,
        out_shape=jax.ShapeDtypeStruct((Tp, Dp), jnp.float32),
        grid_spec=pltpu.PrefetchScalarGridSpec(
            num_scalar_prefetch=1,                 # group counts -> SMEM
            grid=(R,),
            in_specs=[
                pl.BlockSpec((1, G, Dp), lambda r, cnt: (r, 0, 0)),   # x_g
                pl.BlockSpec((1, Dp, Dp), lambda r, cnt: (r, 0, 0)),  # W[r].T
                pl.BlockSpec((1, 1, Dp), lambda r, cnt: (r, 0, 0)),   # bias
                pl.BlockSpec((1, Tp, G), lambda r, cnt: (r, 0, 0)),   # pool_r
                pl.BlockSpec((Tp, 1), lambda r, cnt: (0, 0)),         # 1/count
            ],
            out_specs=pl.BlockSpec((Tp, Dp), lambda r, cnt: (0, 0)),  # resident
        ),
        compiler_params=pltpu.CompilerParams(
            # r is a reduction axis into the resident output accumulator.
            # TODO(synk): for large T add a leading "parallel" target-tile grid
            # axis so both v7x TensorCores split the pooling rows.
            dimension_semantics=("arbitrary",),
            vmem_limit_bytes=32 * 1024 * 1024,
        ),
    )(counts_j, x_g, wt_p, b_p, pool, tinv)

    return out_pad[:T, :D]


def reference(x, W, b, rel_of_v, tgt_of_v, T):
    """Pure numpy mirror of the PyTorch Encoder forward (sanity check)."""
    x = np.asarray(x, np.float64)
    W = np.asarray(W, np.float64)
    b = np.asarray(b, np.float64)
    V, D = x.shape
    R = W.shape[0]
    z = np.zeros((V, D))
    for r in range(R):
        idx = [v for v in range(V) if rel_of_v[v] == r]
        if not idx:
            continue
        zr = x[idx] @ W[r].T + b[r]
        if len(idx) > 1:                 # BatchNorm1d skipped when batch == 1
            mean = zr.mean(axis=0)
            var = zr.var(axis=0)         # biased, training-mode stats
            zr = (zr - mean) / np.sqrt(var + BN_EPS)
        zr = np.maximum(zr, 0.0)
        z[idx] = zr
    out = []
    for t in range(T):
        vs = [v for v in range(V) if tgt_of_v[v] == t]
        out.append(z[vs].mean(axis=0))
    return np.stack(out)


if __name__ == "__main__":
    # Small synthetic problem consistent with the module:
    #   rel_num=2 -> R = 2*rel_num = 4 relation spaces (H/T interleaved),
    #   V=8 neighbor entities, D=32 embedding dim, T=4 target entities.
    V, D, rel_num, T = 8, 32, 2, 4
    R = 2 * rel_num

    key = jax.random.PRNGKey(0)
    kx, kw, kb = jax.random.split(key, 3)
    x = jax.random.normal(kx, (V, D), jnp.float32)

    # Stacked "Linear" params: even r -> transformH[r//2], odd -> transformT[r//2].
    bound = 1.0 / np.sqrt(D)
    W = jax.random.uniform(kw, (R, D, D), jnp.float32, -bound, bound)
    b = jax.random.uniform(kb, (R, D), jnp.float32, -bound, bound)
    # BatchNorm affine params (gamma=1, beta=0 default init) fold to identity.

    # Graph bookkeeping (relations / assign / entities) collapsed to:
    rel_of_v = [0, 0, 0, 1, 1, 2, 2, 3]   # group of size 1 exercises BN-skip
    tgt_of_v = [0, 1, 2, 3, 0, 1, 2, 3]

    out = encoder_forward(x, W, b, rel_of_v, tgt_of_v, T)
    out = jax.block_until_ready(out)

    ref = reference(np.asarray(x), np.asarray(W), np.asarray(b),
                    rel_of_v, tgt_of_v, T)
    # Tolerance covers pl.reciprocal(approx=True) (~2^-12 relative) error.
    np.testing.assert_allclose(np.asarray(out), ref, rtol=5e-3, atol=5e-3)
    assert out.shape == (T, D)
    print("KERNEL_OK")
</pallas_src>

<mosaic_0001>
module attributes {stable_mosaic.version = 11 : i64} {
  func.func @encoder_kernel(%arg0: i32, %arg1: memref<4xi32, #tpu.memory_space<smem>>, %arg2: memref<1x8x128xf32, #tpu.memory_space<vmem>>, %arg3: memref<1x128x128xf32, #tpu.memory_space<vmem>>, %arg4: memref<1x1x128xf32, #tpu.memory_space<vmem>>, %arg5: memref<1x8x8xf32, #tpu.memory_space<vmem>>, %arg6: memref<8x1xf32, #tpu.memory_space<vmem>>, %arg7: memref<8x128xf32, #tpu.memory_space<vmem>>) attributes {dimension_semantics = [#tpu.dimension_semantics<arbitrary>], iteration_bounds = array<i64: 4>, scalar_prefetch = 1 : i64, scratch_operands = 0 : i64, tpu.core_type = #tpu.core_type<tc>, window_params = [{transform_indices = @transform_0, window_bounds = array<i64: 1, 8, 128>}, {transform_indices = @transform_1, window_bounds = array<i64: 1, 128, 128>}, {transform_indices = @transform_2, window_bounds = array<i64: 1, 1, 128>}, {transform_indices = @transform_3, window_bounds = array<i64: 1, 8, 8>}, {pipeline_mode = #tpu.pipeline_mode<synchronous>, transform_indices = @transform_4, window_bounds = array<i64: 8, 1>}, {pipeline_mode = #tpu.pipeline_mode<synchronous>, transform_indices = @transform_5, window_bounds = array<i64: 8, 128>}]} {
    %c0_i32 = arith.constant 0 : i32
    %0 = arith.cmpi eq, %arg0, %c0_i32 : i32
    %1 = arith.extui %0 : i1 to i32
    %c0_i32_0 = arith.constant 0 : i32
    %2 = arith.cmpi ne, %1, %c0_i32_0 : i32
    scf.if %2 {
      %cst_25 = arith.constant 0.000000e+00 : f32
      %62 = vector.broadcast %cst_25 : f32 to vector<8x128xf32>
      %c0_26 = arith.constant 0 : index
      %c0_27 = arith.constant 0 : index
      %63 = vector.load %arg7[%c0_26, %c0_27] : memref<8x128xf32, #tpu.memory_space<vmem>>, vector<8x128xf32>
      tpu.vector_store %arg7[%c0_26, %c0_27], %62 {strides = array<i32>} : memref<8x128xf32, #tpu.memory_space<vmem>>, vector<8x128xf32>,
    } else {
    }
    %3 = arith.index_cast %arg0 : i32 to index
    %4 = memref.load %arg1[%3] : memref<4xi32, #tpu.memory_space<smem>>
    %c0 = arith.constant 0 : index
    %c0_1 = arith.constant 0 : index
    %c0_2 = arith.constant 0 : index
    %5 = vector.load %arg2[%c0, %c0_1, %c0_2] : memref<1x8x128xf32, #tpu.memory_space<vmem>>, vector<1x8x128xf32>
    %6 = vector.shape_cast %5 : vector<1x8x128xf32> to vector<8x128xf32>
    %c0_3 = arith.constant 0 : index
    %c0_4 = arith.constant 0 : index
    %c0_5 = arith.constant 0 : index
    %7 = vector.load %arg3[%c0_3, %c0_4, %c0_5] : memref<1x128x128xf32, #tpu.memory_space<vmem>>, vector<1x128x128xf32>
    %8 = vector.shape_cast %7 : vector<1x128x128xf32> to vector<128x128xf32>
    %c0_6 = arith.constant 0 : index
    %c0_7 = arith.constant 0 : index
    %c0_8 = arith.constant 0 : index
    %9 = vector.load %arg4[%c0_6, %c0_7, %c0_8] : memref<1x1x128xf32, #tpu.memory_space<vmem>>, vector<1x1x128xf32>
    %10 = vector.shape_cast %9 : vector<1x1x128xf32> to vector<1x128xf32>
    %cst = arith.constant dense<0.000000e+00> : vector<8x128xf32>
    %11 = tpu.matmul %6, %8, %cst {dimension_numbers = #tpu.dot_dimension_numbers<[1], [0], [0], [1], [0, 0, 1, 1], [], []>} : vector<8x128xf32>, vector<128x128xf32>, vector<8x128xf32> -> vector<8x128xf32>
    %12 = vector.broadcast %10 : vector<1x128xf32> to vector<8x128xf32>
    %13 = arith.addf %11, %12 : vector<8x128xf32>
    %14 = tpu.iota {dimensions = array<i32: 0>} : vector<8x1xi32>
    %15 = vector.broadcast %4 : i32 to vector<8x1xi32>
    %16 = arith.cmpi slt, %14, %15 : vector<8x1xi32>
    %17 = arith.extui %16 : vector<8x1xi1> to vector<8x1xi32>
    %18 = arith.sitofp %17 : vector<8x1xi32> to vector<8x1xf32>
    %19 = arith.sitofp %4 : i32 to f32
    %cst_9 = arith.constant 1.000000e+00 : f32
    %20 = arith.maximumf %19, %cst_9 : f32
    %cst_10 = arith.constant 1.000000e+00 : f32
    %21 = vector.broadcast %cst_10 : f32 to vector<1x1xf32>
    %22 = vector.broadcast %20 : f32 to vector<1x1xf32>
    %23 = arith.mulf %22, %21 : vector<1x1xf32>
    %24 = tpu.reciprocal %23 {approx = true} : vector<1x1xf32> -> vector<1x1xf32>
    %25 = vector.broadcast %18 : vector<8x1xf32> to vector<8x128xf32>
    %26 = arith.mulf %25, %13 : vector<8x128xf32>
    %cst_11 = arith.constant dense<0.000000e+00> : vector<128xf32>
    %27 = vector.multi_reduction <add>, %26, %cst_11 [0] : vector<8x128xf32> to vector<128xf32>
    %28 = vector.shape_cast %27 : vector<128xf32> to vector<1x128xf32>
    %29 = arith.mulf %26, %13 : vector<8x128xf32>
    %cst_12 = arith.constant dense<0.000000e+00> : vector<128xf32>
    %30 = vector.multi_reduction <add>, %29, %cst_12 [0] : vector<8x128xf32> to vector<128xf32>
    %31 = vector.shape_cast %30 : vector<128xf32> to vector<1x128xf32>
    %32 = vector.broadcast %24 : vector<1x1xf32> to vector<1x128xf32>
    %33 = arith.mulf %28, %32 : vector<1x128xf32>
    %34 = vector.broadcast %24 : vector<1x1xf32> to vector<1x128xf32>
    %35 = arith.mulf %31, %34 : vector<1x128xf32>
    %36 = arith.mulf %33, %33 : vector<1x128xf32>
    %37 = arith.subf %35, %36 : vector<1x128xf32>
    %cst_13 = arith.constant 0.000000e+00 : f32
    %38 = vector.broadcast %cst_13 : f32 to vector<1x128xf32>
    %39 = arith.maximumf %37, %38 : vector<1x128xf32>
    %40 = vector.broadcast %33 : vector<1x128xf32> to vector<8x128xf32>
    %41 = arith.subf %13, %40 : vector<8x128xf32>
    %cst_14 = arith.constant 9.99999974E-6 : f32
    %42 = vector.broadcast %cst_14 : f32 to vector<1x128xf32>
    %43 = arith.addf %39, %42 : vector<1x128xf32>
    %44 = math.rsqrt %43 : vector<1x128xf32>
    %45 = vector.broadcast %44 : vector<1x128xf32> to vector<8x128xf32>
    %46 = arith.mulf %41, %45 : vector<8x128xf32>
    %c1_i32 = arith.constant 1 : i32
    %47 = arith.cmpi sgt, %4, %c1_i32 : i32
    %48 = arith.select %47, %46, %13 : vector<8x128xf32>
    %cst_15 = arith.constant 0.000000e+00 : f32
    %49 = vector.broadcast %cst_15 : f32 to vector<8x128xf32>
    %50 = arith.maximumf %48, %49 : vector<8x128xf32>
    %51 = vector.broadcast %18 : vector<8x1xf32> to vector<8x128xf32>
    %52 = arith.mulf %50, %51 : vector<8x128xf32>
    %c0_16 = arith.constant 0 : index
    %c0_17 = arith.constant 0 : index
    %53 = vector.load %arg7[%c0_16, %c0_17] : memref<8x128xf32, #tpu.memory_space<vmem>>, vector<8x128xf32>
    %c0_18 = arith.constant 0 : index
    %c0_19 = arith.constant 0 : index
    %c0_20 = arith.constant 0 : index
    %54 = vector.load %arg5[%c0_18, %c0_19, %c0_20] : memref<1x8x8xf32, #tpu.memory_space<vmem>>, vector<1x8x8xf32>
    %55 = vector.shape_cast %54 : vector<1x8x8xf32> to vector<8x8xf32>
    %cst_21 = arith.constant dense<0.000000e+00> : vector<8x128xf32>
    %56 = tpu.matmul %55, %52, %cst_21 {dimension_numbers = #tpu.dot_dimension_numbers<[1], [0], [0], [1], [0, 0, 1, 1], [], []>} : vector<8x8xf32>, vector<8x128xf32>, vector<8x128xf32> -> vector<8x128xf32>
    %57 = arith.addf %53, %56 : vector<8x128xf32>
    %c0_22 = arith.constant 0 : index
    %c0_23 = arith.constant 0 : index
    %58 = vector.load %arg7[%c0_22, %c0_23] : memref<8x128xf32, #tpu.memory_space<vmem>>, vector<8x128xf32>
    tpu.vector_store %arg7[%c0_22, %c0_23], %57 {strides = array<i32>} : memref<8x128xf32, #tpu.memory_space<vmem>>, vector<8x128xf32>,
    %c3_i32 = arith.constant 3 : i32
    %59 = arith.cmpi eq, %arg0, %c3_i32 : i32
    %60 = arith.extui %59 : i1 to i32
    %c0_i32_24 = arith.constant 0 : i32
    %61 = arith.cmpi ne, %60, %c0_i32_24 : i32
    scf.if %61 {
      %c0_25 = arith.constant 0 : index
      %c0_26 = arith.constant 0 : index
      %62 = vector.load %arg7[%c0_25, %c0_26] : memref<8x128xf32, #tpu.memory_space<vmem>>, vector<8x128xf32>
      %c0_27 = arith.constant 0 : index
      %c0_28 = arith.constant 0 : index
      %63 = vector.load %arg6[%c0_27, %c0_28] : memref<8x1xf32, #tpu.memory_space<vmem>>, vector<8x1xf32>
      %64 = vector.broadcast %63 : vector<8x1xf32> to vector<8x128xf32>
      %65 = arith.mulf %62, %64 : vector<8x128xf32>
      %c0_29 = arith.constant 0 : index
      %c0_30 = arith.constant 0 : index
      %66 = vector.load %arg7[%c0_29, %c0_30] : memref<8x128xf32, #tpu.memory_space<vmem>>, vector<8x128xf32>
      tpu.vector_store %arg7[%c0_29, %c0_30], %65 {strides = array<i32>} : memref<8x128xf32, #tpu.memory_space<vmem>>, vector<8x128xf32>,
    } else {
    }
    return
  }
  func.func @transform_0(%arg0: i32, %arg1: memref<4xi32, #tpu.memory_space<smem>>) -> (i32, i32, i32) {
    %c0_i32 = arith.constant 0 : i32
    %c0_i32_0 = arith.constant 0 : i32
    %c0_i32_1 = arith.constant 0 : i32
    return %arg0, %c0_i32, %c0_i32_0 : i32, i32, i32
  }
  func.func @transform_1(%arg0: i32, %arg1: memref<4xi32, #tpu.memory_space<smem>>) -> (i32, i32, i32) {
    %c0_i32 = arith.constant 0 : i32
    %c0_i32_0 = arith.constant 0 : i32
    %c0_i32_1 = arith.constant 0 : i32
    return %arg0, %c0_i32, %c0_i32_0 : i32, i32, i32
  }
  func.func @transform_2(%arg0: i32, %arg1: memref<4xi32, #tpu.memory_space<smem>>) -> (i32, i32, i32) {
    %c0_i32 = arith.constant 0 : i32
    %c0_i32_0 = arith.constant 0 : i32
    %c0_i32_1 = arith.constant 0 : i32
    return %arg0, %c0_i32, %c0_i32_0 : i32, i32, i32
  }
  func.func @transform_3(%arg0: i32, %arg1: memref<4xi32, #tpu.memory_space<smem>>) -> (i32, i32, i32) {
    %c0_i32 = arith.constant 0 : i32
    %c0_i32_0 = arith.constant 0 : i32
    %c0_i32_1 = arith.constant 0 : i32
    return %arg0, %c0_i32, %c0_i32_0 : i32, i32, i32
  }
  func.func @transform_4(%arg0: i32, %arg1: memref<4xi32, #tpu.memory_space<smem>>) -> (i32, i32) {
    %c0_i32 = arith.constant 0 : i32
    %c0_i32_0 = arith.constant 0 : i32
    %c0_i32_1 = arith.constant 0 : i32
    return %c0_i32, %c0_i32_0 : i32, i32
  }
  func.func @transform_5(%arg0: i32, %arg1: memref<4xi32, #tpu.memory_space<smem>>) -> (i32, i32) {
    %c0_i32 = arith.constant 0 : i32
    %c0_i32_0 = arith.constant 0 : i32
    %c0_i32_1 = arith.constant 0 : i32
    return %c0_i32, %c0_i32_0 : i32, i32
  }
}

</mosaic_0001>

<llo_original>
// kernel: tpu_custom_call.1
$region0: #{tpu_custom_call.1}
  #allocation0 [shape = 'u32[]', space=smem, size = 0x4, offset = 0x4, fixed_abs, tag = 'smem constant byte address 0x4 - core index']
  #allocation1 [shape = 'u32[144,128]{1,0:T(1,128)}', space=vmem, size = 0x12000, scoped, tag = 'internal scratch']
  #allocation2 [shape = 's32[1]{0}', space=sflag, size = 0x4, scoped, tag = 'scoped memory for tpu_custom_call.1']
  #allocation3 [shape = 'u8[512]{0}', space=smem, size = 0x200, scoped, tag = 'prefetched SMEM operand 0']
  %s0 = inlined_call_operand.vmem [shape: s32[4], index: 0, kind: input, shape index: {}]
  %s1 = inlined_call_operand.hbm [shape: f32[4,8,128], index: 1, kind: input, shape index: {}]
  %s2 = inlined_call_operand.hbm [shape: f32[4,128,128], index: 2, kind: input, shape index: {}]
  %s3 = inlined_call_operand.vmem [shape: f32[4,1,128], index: 3, kind: input, shape index: {}]
  %s4 = inlined_call_operand.hbm [shape: f32[4,8,8], index: 4, kind: input, shape index: {}]
  %s5 = inlined_call_operand.vmem [shape: f32[8,1], index: 5, kind: input, shape index: {}]
  %s6 = inlined_call_operand.hbm [shape: f32[8,128], index: 6, kind: output, shape index: {}]
  %s7 = sld [smem:[#allocation0]]
  $region73: #{tpu_custom_call.1} parent=0
    _
  %s9 = ssub.s32 1, %s7
  %s10 = scalar_select 0, %s9, %s7
  %s11 = sshll.u32 %s0, 4
  %s12 = int_to_ptr.vmem [resolvable:$true] %s11
  %14 = dma.vmem_to_smem %s12, 16, [#allocation3], [#allocation2]
  %15 = dma.done [#allocation2], 16
  %16 = sfence
  $region1: #{tpu_custom_call.1} parent=0
    #allocation4 [shape = 'u8[8192]{0}', space=vmem, size = 0x2000, scoped, tag = 'input window, operand 1']
    #allocation5 [shape = 's32[2]{0}', space=sflag, size = 0x8, scoped, tag = 'scoped memory for tpu_custom_call.1']
    #allocation6 [shape = 's32[2]{0}', space=sflag, size = 0x8, scoped, tag = 'scoped memory for tpu_custom_call.1']
    #allocation7 [shape = 'u8[131072]{0}', space=vmem, size = 0x20000, scoped, tag = 'input window, operand 2']
    #allocation8 [shape = 's32[2]{0}', space=sflag, size = 0x8, scoped, tag = 'scoped memory for tpu_custom_call.1']
    #allocation9 [shape = 'u8[8192]{0}', space=vmem, size = 0x2000, scoped, tag = 'input window, operand 4']
    #allocation10 [shape = 'u8[4096]{0}', space=vmem, size = 0x1000, scoped, tag = 'output window, operand 0, single buffered']
    %17 = vsyncpa [#allocation5], 0
    %s18 = scalar_lea.sflag [#allocation5], 1
    %19 = vsyncpa %s18, 0
    %20 = vsyncpa [#allocation8], 0
    %s21 = scalar_lea.sflag [#allocation8], 1
    %22 = vsyncpa %s21, 0
    %23 = vsyncpa [#allocation6], 0
    loop: start=0, step=1, limit=6
    $region2: #{tpu_custom_call.1} parent=1 // loop_pre_header
      _
    $region3: #{tpu_custom_call.1} parent=1 // loop_header
      %s25 = sphi 0, %s29
      %p26 = scmp.ge.s32.totalorder %s25, 6
      %s35 = sphi 0, %s37
      %s38 = sphi 0, %s35
      %s39 = sphi 0, %s38
      %s55 = sphi 0, %s39
      %s61 = sphi 0, %s63
      %s64 = sphi 0, %s61
      %s65 = sphi 0, %s64
      %s81 = sphi 0, %s65
      %s87 = sphi 0, %s89
      %s90 = sphi 0, %s87
      %s91 = sphi 0, %s90
      %s107 = sphi 0, %s91
      %s113 = sphi 0, %s115
      %s116 = sphi 0, %s113
      %s117 = sphi 0, %s116
      %s133 = sphi 0, %s117
      %s137 = sphi 0, %s137
      %s139 = sphi 0, %s137
      %s140 = sphi 0, %s139
      %s154 = sphi 0, %s140
      %s158 = sphi 0, %s158
      %s160 = sphi 0, %s158
      %s161 = sphi 0, %s160
      %s175 = sphi 0, %s161
    $region4: #{tpu_custom_call.1} parent=1 // loop_header_branch
      %28 = sbr.rel (%p26) target = $region8
    $region5: #{tpu_custom_call.1} parent=1 // loop_body
      %s30 = ssub.s32 %s25, 1
      %s31 = ssub.s32 %s25, 2
      %s32 = sadd.s32 %s25, 1
      %s33 = ssub.s32 %s25, %s32
      %p34 = scmp.eq.s32.totalorder %s33, 0
      %s36 = sadd.s32 %s35, 1
      %s37 = scalar_select %p34, %s35, %s36
      %p40 = pneg %p34
      %p41 = scmp.eq.s32.totalorder %s25, 3
      %p42 = por %p40, %p41
      %p43 = scmp.ne.s32.totalorder %s35, %s38
      %p44 = scmp.eq.s32.totalorder %s25, 0
      %p45 = por %p43, %p44
      %p46 = scmp.ne.s32.totalorder %s35, %s38
      %p47 = scmp.eq.s32.totalorder %s30, 3
      %p48 = por %p46, %p47
      %p49 = scmp.ne.s32.totalorder %s38, %s39
      %p50 = scmp.eq.s32.totalorder %s30, 0
      %p51 = por %p49, %p50
      %p52 = scmp.ne.s32.totalorder %s38, %s39
      %p53 = scmp.eq.s32.totalorder %s31, 3
      %p54 = por %p52, %p53
      %p56 = scmp.ne.s32.totalorder %s39, %s55
      %p57 = scmp.eq.s32.totalorder %s31, 0
      %p58 = por %p56, %p57
      %s59 = ssub.s32 %s25, %s32
      %p60 = scmp.eq.s32.totalorder %s59, 0
      %s62 = sadd.s32 %s61, 1
      %s63 = scalar_select %p60, %s61, %s62
      %p66 = pneg %p60
      %p67 = scmp.eq.s32.totalorder %s25, 3
      %p68 = por %p66, %p67
      %p69 = scmp.ne.s32.totalorder %s61, %s64
      %p70 = scmp.eq.s32.totalorder %s25, 0
      %p71 = por %p69, %p70
      %p72 = scmp.ne.s32.totalorder %s61, %s64
      %p73 = scmp.eq.s32.totalorder %s30, 3
      %p74 = por %p72, %p73
      %p75 = scmp.ne.s32.totalorder %s64, %s65
      %p76 = scmp.eq.s32.totalorder %s30, 0
      %p77 = por %p75, %p76
      %p78 = scmp.ne.s32.totalorder %s64, %s65
      %p79 = scmp.eq.s32.totalorder %s31, 3
      %p80 = por %p78, %p79
      %p82 = scmp.ne.s32.totalorder %s65, %s81
      %p83 = scmp.eq.s32.totalorder %s31, 0
      %p84 = por %p82, %p83
      %s85 = ssub.s32 %s25, %s32
      %p86 = scmp.eq.s32.totalorder %s85, 0
      %s88 = sadd.s32 %s87, 1
      %s89 = scalar_select %p86, %s87, %s88
      %p92 = pneg %p86
      %p93 = scmp.eq.s32.totalorder %s25, 3
      %p94 = por %p92, %p93
      %p95 = scmp.ne.s32.totalorder %s87, %s90
      %p96 = scmp.eq.s32.totalorder %s25, 0
      %p97 = por %p95, %p96
      %p98 = scmp.ne.s32.totalorder %s87, %s90
      %p99 = scmp.eq.s32.totalorder %s30, 3
      %p100 = por %p98, %p99
      %p101 = scmp.ne.s32.totalorder %s90, %s91
      %p102 = scmp.eq.s32.totalorder %s30, 0
      %p103 = por %p101, %p102
      %p104 = scmp.ne.s32.totalorder %s90, %s91
      %p105 = scmp.eq.s32.totalorder %s31, 3
      %p106 = por %p104, %p105
      %p108 = scmp.ne.s32.totalorder %s91, %s107
      %p109 = scmp.eq.s32.totalorder %s31, 0
      %p110 = por %p108, %p109
      %s111 = ssub.s32 %s25, %s32
      %p112 = scmp.eq.s32.totalorder %s111, 0
      %s114 = sadd.s32 %s113, 1
      %s115 = scalar_select %p112, %s113, %s114
      %p118 = pneg %p112
      %p119 = scmp.eq.s32.totalorder %s25, 3
      %p120 = por %p118, %p119
      %p121 = scmp.ne.s32.totalorder %s113, %s116
      %p122 = scmp.eq.s32.totalorder %s25, 0
      %p123 = por %p121, %p122
      %p124 = scmp.ne.s32.totalorder %s113, %s116
      %p125 = scmp.eq.s32.totalorder %s30, 3
      %p126 = por %p124, %p125
      %p127 = scmp.ne.s32.totalorder %s116, %s117
      %p128 = scmp.eq.s32.totalorder %s30, 0
      %p129 = por %p127, %p128
      %p130 = scmp.ne.s32.totalorder %s116, %s117
      %p131 = scmp.eq.s32.totalorder %s31, 3
      %p132 = por %p130, %p131
      %p134 = scmp.ne.s32.totalorder %s117, %s133
      %p135 = scmp.eq.s32.totalorder %s31, 0
      %p136 = por %p134, %p135
      %s138 = sadd.s32 %s137, 1
      %p141 = scmp.eq.s32.totalorder %s25, 3
      %p142 = scmp.ne.s32.totalorder %s137, %s139
      %p143 = scmp.eq.s32.totalorder %s25, 0
      %p144 = por %p142, %p143
      %p145 = scmp.ne.s32.totalorder %s137, %s139
      %p146 = scmp.eq.s32.totalorder %s30, 3
      %p147 = por %p145, %p146
      %p148 = scmp.ne.s32.totalorder %s139, %s140
      %p149 = scmp.eq.s32.totalorder %s30, 0
      %p150 = por %p148, %p149
      %p151 = scmp.ne.s32.totalorder %s139, %s140
      %p152 = scmp.eq.s32.totalorder %s31, 3
      %p153 = por %p151, %p152
      %p155 = scmp.ne.s32.totalorder %s140, %s154
      %p156 = scmp.eq.s32.totalorder %s31, 0
      %p157 = por %p155, %p156
      %s159 = sadd.s32 %s158, 1
      %p162 = scmp.eq.s32.totalorder %s25, 3
      %p163 = scmp.ne.s32.totalorder %s158, %s160
      %p164 = scmp.eq.s32.totalorder %s25, 0
      %p165 = por %p163, %p164
      %p166 = scmp.ne.s32.totalorder %s158, %s160
      %p167 = scmp.eq.s32.totalorder %s30, 3
      %p168 = por %p166, %p167
      %p169 = scmp.ne.s32.totalorder %s160, %s161
      %p170 = scmp.eq.s32.totalorder %s30, 0
      %p171 = por %p169, %p170
      %p172 = scmp.ne.s32.totalorder %s160, %s161
      %p173 = scmp.eq.s32.totalorder %s31, 3
      %p174 = por %p172, %p173
      %p176 = scmp.ne.s32.totalorder %s161, %s175
      %p177 = scmp.eq.s32.totalorder %s31, 0
      %p178 = por %p176, %p177
      %p179 = scmp.le.s32.totalorder 1, %s25
      %p180 = scmp.lt.s32.totalorder %s25, 5
      %p181 = pnand %p179, %p180
      %p182 = pneg %p181
      // Predicated region
      $region9: #{tpu_custom_call.1} parent=5 // pred_check
        _
      $region10: #{tpu_custom_call.1} parent=5 // pred_check_branch
        %184 = sbr.rel (%p181) target = $region12
      $region11: #{tpu_custom_call.1} parent=5 // pred_region
        %s185 = ssub.s32 %s25, 1
        // Predicated region
        $region13: #{tpu_custom_call.1} parent=11 // pred_check
          %p186 = pneg %p150
        $region14: #{tpu_custom_call.1} parent=11 // pred_check_branch
          %188 = sbr.rel (%p186) target = $region16
        $region15: #{tpu_custom_call.1} parent=11 // pred_region
          _
        $region16: #{tpu_custom_call.1} parent=11 // pred_fallthru
          _
      $region12: #{tpu_custom_call.1} parent=5 // pred_fallthru
        _
      %p189 = scmp.lt.s32.totalorder %s25, 4
      // Predicated region
      $region17: #{tpu_custom_call.1} parent=5 // pred_check
        %p190 = pneg %p189
      $region18: #{tpu_custom_call.1} parent=5 // pred_check_branch
        %192 = sbr.rel (%p190) target = $region20
      $region19: #{tpu_custom_call.1} parent=5 // pred_region
        // Predicated region
        $region21: #{tpu_custom_call.1} parent=19 // pred_check
          %p193 = pneg %p45
        $region22: #{tpu_custom_call.1} parent=19 // pred_check_branch
          %195 = sbr.rel (%p193) target = $region24
        $region23: #{tpu_custom_call.1} parent=19 // pred_region
          %s196 = sand.u32 %s35, 1
          %s197 = scalar_lea.sflag [#allocation5], %s196
          %s198 = sand.u32 %s35, 1
          %s199 = smul.addr %s198, 8
          %s200 = scalar_lea.vmem [#allocation4], %s199
          %s202 = ssub.s32 128, 128
          %203 = vsyncadd %s197, %s202
          %s204 = smul.addr %s25, 128
          %s205 = scalar_lea.hbm %s1, %s204
          %s207 = sshll.u32 %s200, 4
          %s208 = int_to_ptr.vmem [resolvable:$true] %s207
          %210 = dma.hbm_to_vmem [thread:$0]  %s205, 128, %s208, %s197
        $region24: #{tpu_custom_call.1} parent=19 // pred_fallthru
          _
        // Predicated region
        $region25: #{tpu_custom_call.1} parent=19 // pred_check
          %p211 = pneg %p71
        $region26: #{tpu_custom_call.1} parent=19 // pred_check_branch
          %213 = sbr.rel (%p211) target = $region28
        $region27: #{tpu_custom_call.1} parent=19 // pred_region
          %s214 = sand.u32 %s25, 1
          %s215 = scalar_lea.sflag [#allocation8], %s214
          %s216 = sand.u32 %s61, 1
          %s217 = smul.addr %s216, 128
          %s218 = scalar_lea.vmem [#allocation7], %s217
          %s220 = ssub.s32 2048, 2048
          %221 = vsyncadd %s215, %s220
          %s222 = smul.addr %s25, 16
          %s223 = smul.addr %s222, 128
          %s224 = scalar_lea.hbm %s2, %s223
          %s225 = sshll.u32 %s218, 4
          %s226 = int_to_ptr.vmem [resolvable:$true] %s225
          %231 = dma.hbm_to_vmem [thread:$0]  %s224, 2048, %s226, %s215, 128, 128, 8
        $region28: #{tpu_custom_call.1} parent=19 // pred_fallthru
          _
        // Predicated region
        $region29: #{tpu_custom_call.1} parent=19 // pred_check
          %p232 = pneg %p97
        $region30: #{tpu_custom_call.1} parent=19 // pred_check_branch
          %234 = sbr.rel (%p232) target = $region32
        $region31: #{tpu_custom_call.1} parent=19 // pred_region
          %p235 = scmp.lt.s32.totalorder %s25, 3
          %s236 = scalar_select %p235, %s25, 3
          %s237 = scalar_lea.vmem %s3, %s236
        $region32: #{tpu_custom_call.1} parent=19 // pred_fallthru
          _
        // Predicated region
        $region33: #{tpu_custom_call.1} parent=19 // pred_check
          %p238 = pneg %p123
        $region34: #{tpu_custom_call.1} parent=19 // pred_check_branch
          %240 = sbr.rel (%p238) target = $region36
        $region35: #{tpu_custom_call.1} parent=19 // pred_region
          %s241 = sand.u32 %s25, 1
          %s242 = scalar_lea.sflag [#allocation8], %s241
          %s243 = sand.u32 %s113, 1
          %s244 = smul.addr %s243, 8
          %s245 = scalar_lea.vmem [#allocation9], %s244
          %s247 = ssub.s32 128, 128
          %248 = vsyncadd %s242, %s247
          %s249 = smul.addr %s25, 128
          %s250 = scalar_lea.hbm %s4, %s249
          %s252 = sshll.u32 %s245, 4
          %s253 = int_to_ptr.vmem [resolvable:$true] %s252
          %255 = dma.hbm_to_vmem [thread:$0]  %s250, 128, %s253, %s242
        $region36: #{tpu_custom_call.1} parent=19 // pred_fallthru
          _
      $region20: #{tpu_custom_call.1} parent=5 // pred_fallthru
        _
      %p256 = scmp.le.s32.totalorder 1, %s25
      %p257 = scmp.lt.s32.totalorder %s25, 5
      %p258 = pnand %p256, %p257
      %p259 = pneg %p258
      // Predicated region
      $region37: #{tpu_custom_call.1} parent=5 // pred_check
        _
      $region38: #{tpu_custom_call.1} parent=5 // pred_check_branch
        %261 = sbr.rel (%p258) target = $region40
      $region39: #{tpu_custom_call.1} parent=5 // pred_region
        %s262 = ssub.s32 %s25, 1
        %s263 = sand.u32 %s38, 1
        %s264 = scalar_lea.sflag [#allocation5], %s263
        %s265 = sand.u32 %s38, 1
        %s266 = smul.addr %s265, 8
        %s267 = scalar_lea.vmem [#allocation4], %s266
        // Predicated region
        $region41: #{tpu_custom_call.1} parent=39 // pred_check
          %p268 = pneg %p51
        $region42: #{tpu_custom_call.1} parent=39 // pred_check_branch
          %270 = sbr.rel (%p268) target = $region44
        $region43: #{tpu_custom_call.1} parent=39 // pred_region
          %271 = dma.done %s264, 128
        $region44: #{tpu_custom_call.1} parent=39 // pred_fallthru
          _
        %s272 = sand.u32 %s30, 1
        %s273 = scalar_lea.sflag [#allocation8], %s272
        %s274 = sand.u32 %s64, 1
        %s275 = smul.addr %s274, 128
        %s276 = scalar_lea.vmem [#allocation7], %s275
        // Predicated region
        $region45: #{tpu_custom_call.1} parent=39 // pred_check
          %p277 = pneg %p77
        $region46: #{tpu_custom_call.1} parent=39 // pred_check_branch
          %279 = sbr.rel (%p277) target = $region48
        $region47: #{tpu_custom_call.1} parent=39 // pred_region
          %280 = dma.done %s273, 2048
        $region48: #{tpu_custom_call.1} parent=39 // pred_fallthru
          _
        %s281 = sand.u32 %s30, 1
        %s282 = scalar_lea.sflag [#allocation8], %s281
        %s283 = sand.u32 %s116, 1
        %s284 = smul.addr %s283, 8
        %s285 = scalar_lea.vmem [#allocation9], %s284
        // Predicated region
        $region49: #{tpu_custom_call.1} parent=39 // pred_check
          %p286 = pneg %p129
        $region50: #{tpu_custom_call.1} parent=39 // pred_check_branch
          %288 = sbr.rel (%p286) target = $region52
        $region51: #{tpu_custom_call.1} parent=39 // pred_region
          %289 = dma.done %s282, 128
        $region52: #{tpu_custom_call.1} parent=39 // pred_fallthru
          _
        %s290 = sand.u32 %s38, 1
        %s291 = scalar_lea.sflag [#allocation5], %s290
        %s292 = sand.u32 %s38, 1
        %s293 = smul.addr %s292, 8
        %s294 = scalar_lea.vmem [#allocation4], %s293
        %p295 = pneg %p51
        %p296 = pneg %p48
        %s297 = sand.u32 %s30, 1
        %s298 = scalar_lea.sflag [#allocation8], %s297
        %s299 = sand.u32 %s64, 1
        %s300 = smul.addr %s299, 128
        %s301 = scalar_lea.vmem [#allocation7], %s300
        %p302 = pneg %p77
        %p303 = pneg %p74
        %p304 = scmp.lt.s32.totalorder %s30, 3
        %s305 = scalar_select %p304, %s30, 3
        %s306 = scalar_lea.vmem %s3, %s305
        %p307 = pneg %p103
        %p308 = pneg %p100
        %s309 = sand.u32 %s30, 1
        %s310 = scalar_lea.sflag [#allocation8], %s309
        %s311 = sand.u32 %s116, 1
        %s312 = smul.addr %s311, 8
        %s313 = scalar_lea.vmem [#allocation9], %s312
        %p314 = pneg %p129
        %p315 = pneg %p126
        %p316 = pneg %p150
        %p317 = pneg %p147
        %p318 = pneg %p171
        %p319 = pneg %p168
        %p320 = scmp.lt.s32.totalorder %s30, 3
        %s321 = scalar_select %p320, %s30, 3
        %s322 = scalar_lea.vmem %s3, %s321
        %p323 = scmp.eq.s32.totalorder %s30, 0
        // Predicated region
        $region53: #{tpu_custom_call.1} parent=39 // pred_check
          %p324 = pneg %p323
        $region54: #{tpu_custom_call.1} parent=39 // pred_check_branch
          %326 = sbr.rel (%p324) target = $region56
        $region55: #{tpu_custom_call.1} parent=39 // pred_region
          %327 = vst [vmem:[#allocation10] sm:$0xff] 0.0
        $region56: #{tpu_custom_call.1} parent=39 // pred_fallthru
          _
        %s328 = sld [smem:[#allocation3 + %s30]]
        %v329 = vld [vmem:[%s267] sm:$0xff]
        %v330 = vld [vmem:[%s276] sm:$0xff]
        %v331 = vld [vmem:[%s276 + $0x8] sm:$0xff]
        %v332 = vld [vmem:[%s276 + $0x10] sm:$0xff]
        %v333 = vld [vmem:[%s276 + $0x18] sm:$0xff]
        %v334 = vld [vmem:[%s276 + $0x20] sm:$0xff]
        %v335 = vld [vmem:[%s276 + $0x28] sm:$0xff]
        %v336 = vld [vmem:[%s276 + $0x30] sm:$0xff]
        %v337 = vld [vmem:[%s276 + $0x38] sm:$0xff]
        %v338 = vld [vmem:[%s276 + $0x40] sm:$0xff]
        %v339 = vld [vmem:[%s276 + $0x48] sm:$0xff]
        %v340 = vld [vmem:[%s276 + $0x50] sm:$0xff]
        %v341 = vld [vmem:[%s276 + $0x58] sm:$0xff]
        %v342 = vld [vmem:[%s276 + $0x60] sm:$0xff]
        %v343 = vld [vmem:[%s276 + $0x68] sm:$0xff]
        %v344 = vld [vmem:[%s276 + $0x70] sm:$0xff]
        %v345 = vld [vmem:[%s276 + $0x78] sm:$0xff]
        %v346 = vld [vmem:[%s322] sm:$0x1]
        %v348 = vlaneseq
        %v349 = vshrl.u32 %v348, 7
        %v350 = vsub.s32 0, %v349
        %v351 = vrot.slane %v346, %v350
        %353 = vmatprep.subr.mxu0 0.0
        %354 = vmatpush1.msra.mxu0 %v330
        %355 = vmatprep.subr.mxu0 0.0
        %356 = vmatpush1.msra.mxu0 %v331
        %357 = vmatprep.subr.mxu0 0.0
        %358 = vmatpush1.msra.mxu0 %v332
        %359 = vmatprep.subr.mxu0 0.0
        %360 = vmatpush1.msra.mxu0 %v333
        %361 = vmatprep.subr.mxu0 0.0
        %362 = vmatpush1.msra.mxu0 %v334
        %363 = vmatprep.subr.mxu0 0.0
        %364 = vmatpush1.msra.mxu0 %v335
        %365 = vmatprep.subr.mxu0 0.0
        %366 = vmatpush1.msra.mxu0 %v336
        %367 = vmatprep.subr.mxu0 0.0
        %368 = vmatpush1.msra.mxu0 %v337
        %369 = vmatprep.subr.mxu0 0.0
        %370 = vmatpush1.msra.mxu0 %v338
        %371 = vmatprep.subr.mxu0 0.0
        %372 = vmatpush1.msra.mxu0 %v339
        %373 = vmatprep.subr.mxu0 0.0
        %374 = vmatpush1.msra.mxu0 %v340
        %375 = vmatprep.subr.mxu0 0.0
        %376 = vmatpush1.msra.mxu0 %v341
        %377 = vmatprep.subr.mxu0 0.0
        %378 = vmatpush1.msra.mxu0 %v342
        %379 = vmatprep.subr.mxu0 0.0
        %380 = vmatpush1.msra.mxu0 %v343
        %381 = vmatprep.subr.mxu0 0.0
        %382 = vmatpush1.msra.mxu0 %v344
        %383 = vmatprep.subr.mxu0 0.0
        %384 = vmatpush1.msra.mxu0 %v345
        %385 = vmatprep.subr.mxu0 0.0
        %386 = vmatpush1.msra.mxu0 0.0
        %387 = vmatprep.subr.mxu0 0.0
        %388 = vmatpush1.msra.mxu0 0.0
        %389 = vmatprep.subr.mxu0 0.0
        %390 = vmatpush1.msra.mxu0 0.0
        %391 = vmatprep.subr.mxu0 0.0
        %392 = vmatpush1.msra.mxu0 0.0
        %393 = vmatprep.subr.mxu0 0.0
        %394 = vmatpush1.msra.mxu0 0.0
        %395 = vmatprep.subr.mxu0 0.0
        %396 = vmatpush1.msra.mxu0 0.0
        %397 = vmatprep.subr.mxu0 0.0
        %398 = vmatpush1.msra.mxu0 0.0
        %399 = vmatprep.subr.mxu0 0.0
        %400 = vmatpush1.msra.mxu0 0.0
        %401 = vmatprep.subr.mxu0 0.0
        %402 = vmatpush1.msra.mxu0 0.0
        %403 = vmatprep.subr.mxu0 0.0
        %404 = vmatpush1.msra.mxu0 0.0
        %405 = vmatprep.subr.mxu0 0.0
        %406 = vmatpush1.msra.mxu0 0.0
        %407 = vmatprep.subr.mxu0 0.0
        %408 = vmatpush1.msra.mxu0 0.0
        %409 = vmatprep.subr.mxu0 0.0
        %410 = vmatpush1.msra.mxu0 0.0
        %411 = vmatprep.subr.mxu0 0.0
        %412 = vmatpush1.msra.mxu0 0.0
        %413 = vmatprep.subr.mxu0 0.0
        %414 = vmatpush1.msra.mxu0 0.0
        %415 = vmatprep.subr.mxu0 0.0
        %416 = vmatpush1.msra.mxu0 0.0
        %417 = vmatprep.mubr.f32.mxu0 0.0
        %418 = vmatmul.mubr.f32.gmra.mrb[0].mxu0 %v329
        %v419 = vpop.f32.mrb[0].mxu0
        %v420 = vadd.f32 %v351, %v419
        %v421 = vpop.f32.mrb[0].mxu0
        %422 = vdwg.mxu0
        %v423 = vlaneseq
        %v424 = vshrl.u32 %v423, 7
        %v425 = vstv %s328
        %vm426 = vcmp.lt.s32.totalorder %v424, %v425
        %v427 = vsel %vm426, 1, 0
        %v428 = vcvt.s32.f32 %v427
        %s429 = scvt.s32.f32 %s328
        %s430 = smax.f32 %s429, 1.0
        %v431 = vstv %s430
        %v432 = vrcp.pop %v431
        %v433 = vmul.f32 %v428, %v420
        %v434 = vrot.slane %v433, 4
        %v435 = vadd.f32 %v433, %v434
        %v436 = vrot.slane %v435, 2
        %v437 = vadd.f32 %v435, %v436
        %v438 = vrot.slane %v437, 1
        %v439 = vadd.f32 %v437, %v438
        %v440 = vmul.f32 %v433, %v420
        %v441 = vrot.slane %v440, 4
        %v442 = vadd.f32 %v440, %v441
        %v443 = vrot.slane %v442, 2
        %v444 = vadd.f32 %v442, %v443
        %v445 = vrot.slane %v444, 1
        %v446 = vadd.f32 %v444, %v445
        %v447 = vmul.f32 %v439, %v432
        %v448 = vmul.f32 %v446, %v432
        %v449 = vmul.f32 %v447, %v447
        %v450 = vsub.f32 %v448, %v449
        %v451 = vmax.f32 %v450, 0.0
        %v452 = vsub.f32 %v420, %v447
        %v453 = vadd.f32 %v451, 1e-05
        %v454 = vrsqrt.pop %v453
        %v455 = vmul.f32 %v452, %v454
        %p456 = scmp.gt.s32.totalorder %s328, 1
        %s457 = scalar_select %p456, 1, 0
        %v458 = vstv %s457
        %vm459 = vcmp.eq.s32.totalorder %v458, 1
        %v460 = vsel %vm459, %v455, %v420
        %v461 = vmax.f32 %v460, 0.0
        %v462 = vmul.f32 %v461, %v428
        %v463 = vld [vmem:[#allocation10] sm:$0xff]
        %v464 = vld [vmem:[%s285] sm:$0xff]
        %vm465 = vcmask 64512
        %v467 = vsel %vm465, %v464, 0
        %469 = vmatprep.subr.mxu0 0.0
        %470 = vmatpush1.msra.mxu0 %v462
        %471 = vmatprep.subr.mxu0 0.0
        %472 = vmatpush1.msra.mxu0 0.0
        %473 = vmatprep.subr.mxu0 0.0
        %474 = vmatpush1.msra.mxu0 0.0
        %475 = vmatprep.subr.mxu0 0.0
        %476 = vmatpush1.msra.mxu0 0.0
        %477 = vmatprep.subr.mxu0 0.0
        %478 = vmatpush1.msra.mxu0 0.0
        %479 = vmatprep.subr.mxu0 0.0
        %480 = vmatpush1.msra.mxu0 0.0
        %481 = vmatprep.subr.mxu0 0.0
        %482 = vmatpush1.msra.mxu0 0.0
        %483 = vmatprep.subr.mxu0 0.0
        %484 = vmatpush1.msra.mxu0 0.0
        %485 = vmatprep.subr.mxu0 0.0
        %486 = vmatpush1.msra.mxu0 0.0
        %487 = vmatprep.subr.mxu0 0.0
        %488 = vmatpush1.msra.mxu0 0.0
        %489 = vmatprep.subr.mxu0 0.0
        %490 = vmatpush1.msra.mxu0 0.0
        %491 = vmatprep.subr.mxu0 0.0
        %492 = vmatpush1.msra.mxu0 0.0
        %493 = vmatprep.subr.mxu0 0.0
        %494 = vmatpush1.msra.mxu0 0.0
        %495 = vmatprep.subr.mxu0 0.0
        %496 = vmatpush1.msra.mxu0 0.0
        %497 = vmatprep.subr.mxu0 0.0
        %498 = vmatpush1.msra.mxu0 0.0
        %499 = vmatprep.subr.mxu0 0.0
        %500 = vmatpush1.msra.mxu0 0.0
        %501 = vmatprep.subr.mxu0 0.0
        %502 = vmatpush1.msra.mxu0 0.0
        %503 = vmatprep.subr.mxu0 0.0
        %504 = vmatpush1.msra.mxu0 0.0
        %505 = vmatprep.subr.mxu0 0.0
        %506 = vmatpush1.msra.mxu0 0.0
        %507 = vmatprep.subr.mxu0 0.0
        %508 = vmatpush1.msra.mxu0 0.0
        %509 = vmatprep.subr.mxu0 0.0
        %510 = vmatpush1.msra.mxu0 0.0
        %511 = vmatprep.subr.mxu0 0.0
        %512 = vmatpush1.msra.mxu0 0.0
        %513 = vmatprep.subr.mxu0 0.0
        %514 = vmatpush1.msra.mxu0 0.0
        %515 = vmatprep.subr.mxu0 0.0
        %516 = vmatpush1.msra.mxu0 0.0
        %517 = vmatprep.subr.mxu0 0.0
        %518 = vmatpush1.msra.mxu0 0.0
        %519 = vmatprep.subr.mxu0 0.0
        %520 = vmatpush1.msra.mxu0 0.0
        %521 = vmatprep.subr.mxu0 0.0
        %522 = vmatpush1.msra.mxu0 0.0
        %523 = vmatprep.subr.mxu0 0.0
        %524 = vmatpush1.msra.mxu0 0.0
        %525 = vmatprep.subr.mxu0 0.0
        %526 = vmatpush1.msra.mxu0 0.0
        %527 = vmatprep.subr.mxu0 0.0
        %528 = vmatpush1.msra.mxu0 0.0
        %529 = vmatprep.subr.mxu0 0.0
        %530 = vmatpush1.msra.mxu0 0.0
        %531 = vmatprep.subr.mxu0 0.0
        %532 = vmatpush1.msra.mxu0 0.0
        %533 = vmatprep.mubr.f32.mxu0 0.0
        %534 = vmatmul.mubr.f32.gmra.mrb[0].mxu0 %v467
        %v535 = vpop.f32.mrb[0].mxu0
        %v536 = vadd.f32 0.0, %v535
        %v537 = vpop.f32.mrb[0].mxu0
        %538 = vdwg.mxu0
        %v539 = vadd.f32 %v463, %v536
        %540 = vst [vmem:[#allocation10] sm:$0xff] %v539
        %p541 = scmp.eq.s32.totalorder %s30, 3
        // Predicated region
        $region57: #{tpu_custom_call.1} parent=39 // pred_check
          %p542 = pneg %p541
        $region58: #{tpu_custom_call.1} parent=39 // pred_check_branch
          %544 = sbr.rel (%p542) target = $region60
        $region59: #{tpu_custom_call.1} parent=39 // pred_region
          %v545 = vld [vmem:[#allocation10] sm:$0xff]
          %v546 = vld [vmem:[%s5] sm:$0xff]
          %548 = vset.pattern.permute.xlu0 0
          %549 = vperm.xlu0 %548, %v546
          %v550 = vpop.permute.xlu0 %549
          %v552 = vmul.f32 %v545, %v550
          %553 = vst [vmem:[#allocation10] sm:$0xff] %v552
        $region60: #{tpu_custom_call.1} parent=39 // pred_fallthru
          _
        // Predicated region
        $region61: #{tpu_custom_call.1} parent=39 // pred_check
          %p554 = pneg %p168
        $region62: #{tpu_custom_call.1} parent=39 // pred_check_branch
          %556 = sbr.rel (%p554) target = $region64
        $region63: #{tpu_custom_call.1} parent=39 // pred_region
          %s558 = ssub.s32 128, 128
          %559 = vsyncadd [#allocation6], %s558
          %s561 = sshll.u32 [#allocation10], 4
          %s562 = int_to_ptr.vmem [resolvable:$true] %s561
          %564 = dma.vmem_to_hbm [thread:$0]  %s562, 128, %s6, [#allocation6]
        $region64: #{tpu_custom_call.1} parent=39 // pred_fallthru
          _
        // Predicated region
        $region65: #{tpu_custom_call.1} parent=39 // pred_check
          %p565 = pneg %p168
        $region66: #{tpu_custom_call.1} parent=39 // pred_check_branch
          %567 = sbr.rel (%p565) target = $region68
        $region67: #{tpu_custom_call.1} parent=39 // pred_region
          %568 = dma.done [#allocation6], 128
        $region68: #{tpu_custom_call.1} parent=39 // pred_fallthru
          _
      $region40: #{tpu_custom_call.1} parent=5 // pred_fallthru
        _
      %p569 = scmp.le.s32.totalorder 2, %s25
      // Predicated region
      $region69: #{tpu_custom_call.1} parent=5 // pred_check
        %p570 = pneg %p569
      $region70: #{tpu_custom_call.1} parent=5 // pred_check_branch
        %572 = sbr.rel (%p570) target = $region72
      $region71: #{tpu_custom_call.1} parent=5 // pred_region
        %s573 = ssub.s32 %s25, 2
      $region72: #{tpu_custom_call.1} parent=5 // pred_fallthru
        _
    $region6: #{tpu_custom_call.1} parent=1 // loop_footer
      %s29 = sadd.s32 1, %s25
    $region7: #{tpu_custom_call.1} parent=1 // loop_footer_branch
      %24 = sbr.rel target = $region3
    $region8: #{tpu_custom_call.1} parent=1 // loop_exit
      _
    %574 = vsyncpa [#allocation5], 1
    %s575 = scalar_lea.sflag [#allocation5], 1
    %576 = vsyncpa %s575, 1
    %577 = vsyncpa [#allocation8], 1
    %s578 = scalar_lea.sflag [#allocation8], 1
    %579 = vsyncpa %s578, 1
    %580 = vsyncpa [#allocation6], 1
    %s581 = scalar_lea.sflag [#allocation6], 1
    %582 = vsyncpa %s581, 1

</llo_original>
